<compile_context>
chip_gen: v7x
topology: tpu7x:2x2x1
jax: 0.10.0
libtpu: 0.0.40
codegen_flags: <defaults>
</compile_context>

<pallas_src>
import math

import jax
import jax.numpy as jnp
from jax import lax
from jax.experimental import pallas as pl
from jax.experimental.pallas import tpu as pltpu


# ----------------------------------------------------------------------------
# Parameter construction (plain JAX glue — mirrors the module's __init__/init)
# ----------------------------------------------------------------------------
def build_2d_sincos_posemb(h, w, embed_dim, temperature=10000.0):
    """Exact replica of MultiMAE's build_2d_sincos_posemb (including its
    meshgrid/rearrange ordering quirk). Returns (1, embed_dim, h, w)."""
    grid_w = jnp.arange(w, dtype=jnp.float32)
    grid_h = jnp.arange(h, dtype=jnp.float32)
    gw, gh = jnp.meshgrid(grid_w, grid_h, indexing="ij")  # shapes (w, h)
    assert embed_dim % 4 == 0
    pos_dim = embed_dim // 4
    omega = jnp.arange(pos_dim, dtype=jnp.float32) / pos_dim
    omega = 1.0 / (temperature ** omega)
    out_w = gw.reshape(-1)[:, None] * omega[None, :]
    out_h = gh.reshape(-1)[:, None] * omega[None, :]
    pos_emb = jnp.concatenate(
        [jnp.sin(out_w), jnp.cos(out_w), jnp.sin(out_h), jnp.cos(out_h)], axis=1
    )[None, :, :]                                        # (1, h*w, D)
    # rearrange 'b (h w) d -> b d h w'
    pos_emb = pos_emb.reshape(1, h, w, embed_dim).transpose(0, 3, 1, 2)
    return pos_emb.astype(jnp.float32)


def _cubic_kernel(x, A=-0.75):
    ax = jnp.abs(x)
    return jnp.where(
        ax <= 1.0,
        ((A + 2.0) * ax - (A + 3.0)) * ax * ax + 1.0,
        jnp.where(ax < 2.0, ((A * ax - 5.0 * A) * ax + 8.0 * A) * ax - 4.0 * A, 0.0),
    )


def _bicubic_resize_axis(x, out_size, axis):
    """torch.nn.functional.interpolate(mode='bicubic', align_corners=False,
    antialias=False) along one axis (A = -0.75, edge-clamped)."""
    in_size = x.shape[axis]
    if in_size == out_size:
        return x
    scale = in_size / out_size
    dst = jnp.arange(out_size, dtype=jnp.float32)
    src = (dst + 0.5) * scale - 0.5
    i0 = jnp.floor(src).astype(jnp.int32)
    t = src - i0.astype(jnp.float32)
    w = jnp.stack(
        [_cubic_kernel(t + 1.0), _cubic_kernel(t), _cubic_kernel(1.0 - t),
         _cubic_kernel(2.0 - t)], axis=-1)                       # (out, 4)
    idx = jnp.clip(i0[:, None] + jnp.arange(-1, 3)[None, :], 0, in_size - 1)  # (out,4)
    xm = jnp.moveaxis(x, axis, -1)                               # (..., in)
    g = jnp.take(xm, idx.reshape(-1), axis=-1)                   # (..., out*4)
    g = g.reshape(xm.shape[:-1] + (out_size, 4))
    res = jnp.einsum("...of,of->...o", g, w)
    return jnp.moveaxis(res, -1, axis)


def bicubic_resize(pos_emb, out_h, out_w):
    """pos_emb: (1, D, h, w) -> (1, D, out_h, out_w), torch-bicubic semantics."""
    y = _bicubic_resize_axis(pos_emb, out_h, axis=2)
    y = _bicubic_resize_axis(y, out_w, axis=3)
    return y


# ----------------------------------------------------------------------------
# Pallas kernel: fused patch-projection matmul + (pos-emb + bias) epilogue
# ----------------------------------------------------------------------------
def _patch_embed_kernel(x_ref, w_ref, posb_ref, o_ref):
    # x_ref:    (1, TN, Kp)  bf16 patches for one (n-tile, batch) grid step
    # w_ref:    (Kp, D)      bf16 flattened conv weight (grid-resident block)
    # posb_ref: (TN, D)      f32  positional embedding + conv bias (folded)
    # o_ref:    (1, TN, D)   output tokens (f32 or bf16)
    acc = jnp.dot(x_ref[0], w_ref[...], preferred_element_type=jnp.float32)
    o_ref[0] = (acc + posb_ref[...]).astype(o_ref.dtype)


def _cdiv(a, b):
    return -(-a // b)


def _round_up(a, m):
    return _cdiv(a, m) * m


def _pick_n_tile(N, B, target=512, min_steps=2):
    """Token-tile size along N.  Prefers multiples of 256 (whole-MXU M passes
    on v6e/v7x), then 128, then 16 (bf16 sublane packing).  TN need NOT divide
    N (grid uses cdiv; Pallas masks the ragged edge block).  Shrinks TN if
    needed so the grid has at least `min_steps` steps (v7x megacore)."""
    TN = min(N, target)
    if TN >= 256:
        TN -= TN % 256
    elif TN >= 128:
        TN -= TN % 128
    elif TN >= 16:
        TN -= TN % 16
    TN = max(TN, 8)
    while B * _cdiv(N, TN) < min_steps and TN > 16:
        TN = max(16, _round_up(_cdiv(TN, 2), 16))
    return TN


def patched_input_adapter_forward(x, weight, bias, pos_emb, P_H, P_W,
                                  *, out_dtype=jnp.float32, n_tile_target=512):
    """x: (B, C, H, W) NCHW; weight: (D, C, P_H, P_W); bias: (D,);
    pos_emb: (1, D, h_posemb, w_posemb). Returns (B, N_H*N_W, D) `out_dtype`.

    Pass out_dtype=jnp.bfloat16 when the downstream ViT runs bf16 — it halves
    the dominant output HBM stream of this memory-bound kernel."""
    B, C, H, W = x.shape
    D = weight.shape[0]
    assert H % P_H == 0 and W % P_W == 0
    N_H, N_W = H // P_H, W // P_W
    N = N_H * N_W
    K = C * P_H * P_W
    Kp = _round_up(K, 128)     # lane-dense loads / fully-fed MXU contraction

    # --- patchify expressed as a pure layout producer (Conv2d stride==kernel
    # semantics, channel-major K flattening matching OIHW weight flattening).
    # With allow_input_fusion below, XLA fuses this cast/reshape/transpose/pad
    # into the pallas_call's input DMA -> no xp materialization in HBM.
    xp = x.astype(jnp.bfloat16).reshape(B, C, N_H, P_H, N_W, P_W)
    xp = xp.transpose(0, 2, 4, 1, 3, 5).reshape(B, N, K)
    if Kp != K:
        xp = jnp.pad(xp, ((0, 0), (0, 0), (0, Kp - K)))          # zero-pad: no-op

    w_flat = weight.reshape(D, K).T.astype(jnp.bfloat16)          # (K, D)
    if Kp != K:
        w_flat = jnp.pad(w_flat, ((0, Kp - K), (0, 0)))           # (Kp, D)

    # --- F.interpolate(pos_emb, (N_H, N_W), mode='bicubic') and fold the conv
    # bias into it (one fewer VPU add / operand per grid step).
    pos = bicubic_resize(pos_emb.astype(jnp.float32), N_H, N_W)   # (1,D,NH,NW)
    posb = pos[0].transpose(1, 2, 0).reshape(N, D) + bias[None, :].astype(jnp.float32)

    TN = _pick_n_tile(N, B, n_tile_target)
    n_tiles = _cdiv(N, TN)

    out_itemsize = jnp.dtype(out_dtype).itemsize
    # Per-step VMEM footprint (pipeline double-buffers each operand/output).
    bytes_per_step = (2 * TN * Kp * 2            # x    (bf16)
                      + 2 * Kp * D * 2           # w    (bf16)
                      + 2 * TN * D * 4           # posb (f32)
                      + 2 * TN * D * out_itemsize)  # out
    # Request ~2x the footprint; cap well under v7x's 64 MiB per-TC VMEM.
    vmem_limit = int(min(max(2 * bytes_per_step, 8 * 1024 * 1024),
                         48 * 1024 * 1024))

    cost = pl.CostEstimate(
        flops=2 * B * N * Kp * D,
        transcendentals=0,
        bytes_accessed=(B * N * Kp * 2 + Kp * D * 2 + N * D * 4
                        + B * N * D * out_itemsize),
    )

    # Grid = (N_tiles, B): B is innermost so the posb block (index (n, 0)) is
    # reused across the batch without re-DMA; both axes parallel for megacore.
    out = pl.pallas_call(
        _patch_embed_kernel,
        out_shape=jax.ShapeDtypeStruct((B, N, D), out_dtype),
        grid=(n_tiles, B),
        in_specs=[
            pl.BlockSpec((1, TN, Kp), lambda n, b: (b, n, 0)),
            pl.BlockSpec((Kp, D), lambda n, b: (0, 0)),
            pl.BlockSpec((TN, D), lambda n, b: (n, 0)),
        ],
        out_specs=pl.BlockSpec((1, TN, D), lambda n, b: (b, n, 0)),
        compiler_params=pltpu.CompilerParams(
            dimension_semantics=("parallel", "parallel"),
            vmem_limit_bytes=vmem_limit,
            allow_input_fusion=[True, False, False]),
        cost_estimate=cost,
    )(xp, w_flat, posb)
    return out


# ----------------------------------------------------------------------------
# Demo / self-check
# ----------------------------------------------------------------------------
if __name__ == "__main__":
    # Module config: num_channels=4, stride_level=1, patch_size_full=4,
    # dim_tokens=128, image_size=16 -> P_H=P_W=4, h_posemb=w_posemb=4.
    # Forward input is 24x16 (divisible by the patch size) so the demo also
    # exercises the bicubic pos-emb resize (4x4 -> 6x4) and the ragged
    # cdiv-tiled edge block (N=24, TN=16).
    num_channels, stride_level, patch_size_full, dim_tokens, image_size = 4, 1, 4, 128, 16
    P_H = max(1, patch_size_full // stride_level)
    P_W = max(1, patch_size_full // stride_level)
    h_posemb = image_size // (stride_level * P_H)
    w_posemb = image_size // (stride_level * P_W)

    key = jax.random.PRNGKey(0)
    kx, kw, kb = jax.random.split(key, 3)

    B, C, H, W = 2, num_channels, 24, 16
    x = jax.random.normal(kx, (B, C, H, W), dtype=jnp.float32)

    # Deterministic Conv2d-style init (kaiming-uniform-like bounds).
    fan_in = C * P_H * P_W
    bound = 1.0 / math.sqrt(fan_in)
    weight = jax.random.uniform(kw, (dim_tokens, C, P_H, P_W), jnp.float32, -bound, bound)
    bias = jax.random.uniform(kb, (dim_tokens,), jnp.float32, -bound, bound)

    # sincos_pos_emb=True path
    pos_emb = build_2d_sincos_posemb(h_posemb, w_posemb, dim_tokens)

    fwd = jax.jit(patched_input_adapter_forward, static_argnums=(4, 5),
                  static_argnames=("out_dtype", "n_tile_target"))

    out = jax.block_until_ready(
        fwd(x, weight, bias, pos_emb, P_H, P_W, out_dtype=jnp.float32))

    N_H, N_W = H // P_H, W // P_W
    N, K = N_H * N_W, C * P_H * P_W
    assert out.shape == (B, N, dim_tokens)

    pos_ref = bicubic_resize(pos_emb, N_H, N_W)[0].transpose(1, 2, 0).reshape(
        N, dim_tokens)

    # Reference 1: exact math the kernel performs (bf16 operands, f32 accumulate).
    xp_ref = x.astype(jnp.bfloat16).reshape(B, C, N_H, P_H, N_W, P_W)
    xp_ref = xp_ref.transpose(0, 2, 4, 1, 3, 5).reshape(B, N, K).astype(jnp.float32)
    w_ref = weight.reshape(dim_tokens, K).T.astype(jnp.bfloat16).astype(jnp.float32)
    ref_exact = (jnp.einsum("bnk,kd->bnd", xp_ref, w_ref)
                 + pos_ref[None] + bias[None, None, :])
    err_exact = float(jnp.abs(out - ref_exact).max())
    assert jnp.allclose(out, ref_exact, atol=1e-4, rtol=1e-4), err_exact

    # Reference 2: PyTorch-equivalent full-precision forward (strided conv).
    conv = lax.conv_general_dilated(
        x, weight, window_strides=(P_H, P_W), padding="VALID",
        dimension_numbers=("NCHW", "OIHW", "NCHW"))
    conv = conv + bias[None, :, None, None]
    ref = conv.transpose(0, 2, 3, 1).reshape(B, N, dim_tokens) + pos_ref[None]
    err = float(jnp.abs(out - ref).max())
    assert jnp.allclose(out, ref, atol=5e-2, rtol=5e-2), err  # bf16-operand tolerance

    # bf16-output path (for bf16 downstream ViTs): halves the output HBM stream.
    out_bf16 = jax.block_until_ready(
        fwd(x, weight, bias, pos_emb, P_H, P_W, out_dtype=jnp.bfloat16))
    assert out_bf16.dtype == jnp.bfloat16
    err_bf16 = float(jnp.abs(out_bf16.astype(jnp.float32) - ref_exact).max())
    assert jnp.allclose(out_bf16.astype(jnp.float32), ref_exact,
                        atol=2e-2, rtol=2e-2), err_bf16

    print("KERNEL_OK")
</pallas_src>

<mosaic_0001>
module attributes {stable_mosaic.version = 11 : i64} {
  func.func @_patch_embed_kernel(%arg0: i32, %arg1: i32, %arg2: memref<1x16x128xbf16, #tpu.memory_space<vmem>>, %arg3: memref<128x128xbf16, #tpu.memory_space<vmem>>, %arg4: memref<16x128xf32, #tpu.memory_space<vmem>>, %arg5: memref<1x16x128xf32, #tpu.memory_space<vmem>>) attributes {dimension_semantics = [#tpu.dimension_semantics<parallel>, #tpu.dimension_semantics<parallel>], iteration_bounds = array<i64: 2, 2>, scalar_prefetch = 0 : i64, scratch_operands = 0 : i64, tpu.core_type = #tpu.core_type<tc>, window_params = [{transform_indices = @transform_0, window_bounds = array<i64: 1, 16, 128>}, {pipeline_mode = #tpu.pipeline_mode<synchronous>, transform_indices = @transform_1, window_bounds = array<i64: 128, 128>}, {transform_indices = @transform_2, window_bounds = array<i64: 16, 128>}, {transform_indices = @transform_3, window_bounds = array<i64: 1, 16, 128>}]} {
    %c0 = arith.constant 0 : index
    %c0_0 = arith.constant 0 : index
    %c0_1 = arith.constant 0 : index
    %0 = vector.load %arg2[%c0, %c0_0, %c0_1] : memref<1x16x128xbf16, #tpu.memory_space<vmem>>, vector<1x16x128xbf16>
    %1 = vector.shape_cast %0 : vector<1x16x128xbf16> to vector<16x128xbf16>
    %c0_2 = arith.constant 0 : index
    %c0_3 = arith.constant 0 : index
    %2 = vector.load %arg3[%c0_2, %c0_3] : memref<128x128xbf16, #tpu.memory_space<vmem>>, vector<128x128xbf16>
    %cst = arith.constant dense<0.000000e+00> : vector<16x128xf32>
    %3 = tpu.matmul %1, %2, %cst {dimension_numbers = #tpu.dot_dimension_numbers<[1], [0], [0], [1], [0, 0, 1, 1], [], []>} : vector<16x128xbf16>, vector<128x128xbf16>, vector<16x128xf32> -> vector<16x128xf32>
    %c0_4 = arith.constant 0 : index
    %c0_5 = arith.constant 0 : index
    %4 = vector.load %arg4[%c0_4, %c0_5] : memref<16x128xf32, #tpu.memory_space<vmem>>, vector<16x128xf32>
    %5 = arith.addf %3, %4 : vector<16x128xf32>
    %c0_6 = arith.constant 0 : index
    %c0_7 = arith.constant 0 : index
    %c0_8 = arith.constant 0 : index
    %6 = vector.load %arg5[%c0_6, %c0_7, %c0_8] : memref<1x16x128xf32, #tpu.memory_space<vmem>>, vector<1x16x128xf32>
    %7 = vector.shape_cast %6 : vector<1x16x128xf32> to vector<16x128xf32>
    %8 = vector.shape_cast %5 : vector<16x128xf32> to vector<1x16x128xf32>
    tpu.vector_store %arg5[%c0_6, %c0_7, %c0_8], %8 {strides = array<i32>} : memref<1x16x128xf32, #tpu.memory_space<vmem>>, vector<1x16x128xf32>,
    return
  }
  func.func @transform_0(%arg0: i32, %arg1: i32) -> (i32, i32, i32) {
    %c0_i32 = arith.constant 0 : i32
    %c0_i32_0 = arith.constant 0 : i32
    return %arg1, %arg0, %c0_i32 : i32, i32, i32
  }
  func.func @transform_1(%arg0: i32, %arg1: i32) -> (i32, i32) {
    %c0_i32 = arith.constant 0 : i32
    %c0_i32_0 = arith.constant 0 : i32
    %c0_i32_1 = arith.constant 0 : i32
    return %c0_i32, %c0_i32_0 : i32, i32
  }
  func.func @transform_2(%arg0: i32, %arg1: i32) -> (i32, i32) {
    %c0_i32 = arith.constant 0 : i32
    %c0_i32_0 = arith.constant 0 : i32
    return %arg0, %c0_i32 : i32, i32
  }
  func.func @transform_3(%arg0: i32, %arg1: i32) -> (i32, i32, i32) {
    %c0_i32 = arith.constant 0 : i32
    %c0_i32_0 = arith.constant 0 : i32
    return %arg1, %arg0, %c0_i32 : i32, i32, i32
  }
}

</mosaic_0001>

<llo_original>
// kernel: patched_input_adapter_forward.2
$region0: #{patched_input_adapter_forward.2}
  #allocation0 [shape = 'u32[]', space=smem, size = 0x4, offset = 0x4, fixed_abs, tag = 'smem constant byte address 0x4 - core index']
  #allocation1 [shape = 'u32[144,128]{1,0:T(1,128)}', space=vmem, size = 0x12000, scoped, tag = 'internal scratch']
  #allocation2 [shape = 'u32[2048]{0}', space=vmem, size = 0x2000, scoped, tag = 'scoped memory for patched_input_adapter_forward.2']
  #allocation3 [shape = 'u32[2048]{0}', space=vmem, size = 0x2000, scoped, tag = 'scoped memory for patched_input_adapter_forward.2']
  #allocation4 [shape = 'u32[2048]{0}', space=vmem, size = 0x2000, scoped, tag = 'scoped memory for patched_input_adapter_forward.2']
  #allocation5 [shape = 'u32[2048]{0}', space=vmem, size = 0x2000, scoped, tag = 'scoped memory for patched_input_adapter_forward.2']
  #allocation6 [shape = 'u32[2048]{0}', space=vmem, size = 0x2000, scoped, tag = 'scoped memory for patched_input_adapter_forward.2']
  %s0 = inlined_call_operand.vmem [shape: bf16[128,128], index: 0, kind: input, shape index: {}]
  %s1 = inlined_call_operand.vmem [shape: f32[24,128], index: 1, kind: input, shape index: {}]
  %s2 = inlined_call_operand.vmem [shape: bf16[2,24,64], index: 2, kind: input, shape index: {}]
  %s3 = inlined_call_operand.<no memory space> [shape: bf16[], index: 3, kind: input, shape index: {}]
  %s4 = inlined_call_operand.hbm [shape: f32[2,24,128], index: 4, kind: output, shape index: {}]
  %s5 = sld [smem:[#allocation0]]
  $region45: #{patched_input_adapter_forward.2} parent=0
    _
  %s7 = ssub.s32 1, %s5
  %s8 = scalar_select 0, %s7, %s5
  %v9 = vstv %s3
  %v10 = vunpack.i.l.bf16 %v9
  %v12 = vunpack.i.h.bf16 %v9
  $region1: #{patched_input_adapter_forward.2} parent=0
    #allocation7 [shape = 'u8[16384]{0}', space=vmem, size = 0x4000, scoped, tag = 'output window, operand 0']
    #allocation8 [shape = 's32[2]{0}', space=sflag, size = 0x8, scoped, tag = 'scoped memory for patched_input_adapter_forward.2']
    %14 = vsyncpa [#allocation8], 0
    %s15 = scalar_lea.sflag [#allocation8], 1
    %16 = vsyncpa %s15, 0
    loop: start=0, step=1, limit=6
    $region2: #{patched_input_adapter_forward.2} parent=1 // loop_pre_header
      _
    $region3: #{patched_input_adapter_forward.2} parent=1 // loop_header
      %s18 = sphi 0, %s22
      %p19 = scmp.ge.s32.totalorder %s18, 6
      %s25 = sphi 0, %s37
      %s26 = sphi 0, %s33
      %s27 = sphi 0, %s25
      %s28 = sphi 0, %s26
      %s29 = sphi 0, %s27
      %s30 = sphi 0, %s28
      %s42 = sphi 0, %s44
      %s45 = sphi 0, %s42
      %s46 = sphi 0, %s45
      %s62 = sphi 0, %s46
      %s66 = sphi 0, %s66
      %s68 = sphi 0, %s66
      %s69 = sphi 0, %s68
      %s83 = sphi 0, %s69
      %s89 = sphi 0, %s91
      %s92 = sphi 0, %s89
      %s93 = sphi 0, %s92
      %s109 = sphi 0, %s93
      %s117 = sphi 0, %s119
      %s120 = sphi 0, %s117
      %s121 = sphi 0, %s120
      %s137 = sphi 0, %s121
    $region4: #{patched_input_adapter_forward.2} parent=1 // loop_header_branch
      %21 = sbr.rel (%p19) target = $region8
    $region5: #{patched_input_adapter_forward.2} parent=1 // loop_body
      %s23 = ssub.s32 %s18, 1
      %s24 = ssub.s32 %s18, 2
      %s31 = sadd.s32 1, %s26
      %p32 = scmp.ge.s32.totalorder %s31, 2
      %s33 = scalar_select %p32, 0, %s31
      %s34 = sadd.s32 1, %s25
      %s35 = scalar_select %p32, %s34, %s25
      %p36 = scmp.ge.s32.totalorder %s35, 2
      %s37 = scalar_select %p36, 0, %s35
      %s38 = ssub.s32 %s26, %s33
      %s39 = ssub.s32 %s25, %s37
      %s40 = sor.u32 %s38, %s39
      %p41 = scmp.eq.s32.totalorder %s40, 0
      %s43 = sadd.s32 %s42, 1
      %s44 = scalar_select %p41, %s42, %s43
      %p47 = pneg %p41
      %p48 = scmp.eq.s32.totalorder %s18, 3
      %p49 = por %p47, %p48
      %p50 = scmp.ne.s32.totalorder %s42, %s45
      %p51 = scmp.eq.s32.totalorder %s18, 0
      %p52 = por %p50, %p51
      %p53 = scmp.ne.s32.totalorder %s42, %s45
      %p54 = scmp.eq.s32.totalorder %s23, 3
      %p55 = por %p53, %p54
      %p56 = scmp.ne.s32.totalorder %s45, %s46
      %p57 = scmp.eq.s32.totalorder %s23, 0
      %p58 = por %p56, %p57
      %p59 = scmp.ne.s32.totalorder %s45, %s46
      %p60 = scmp.eq.s32.totalorder %s24, 3
      %p61 = por %p59, %p60
      %p63 = scmp.ne.s32.totalorder %s46, %s62
      %p64 = scmp.eq.s32.totalorder %s24, 0
      %p65 = por %p63, %p64
      %s67 = sadd.s32 %s66, 1
      %p70 = scmp.eq.s32.totalorder %s18, 3
      %p71 = scmp.ne.s32.totalorder %s66, %s68
      %p72 = scmp.eq.s32.totalorder %s18, 0
      %p73 = por %p71, %p72
      %p74 = scmp.ne.s32.totalorder %s66, %s68
      %p75 = scmp.eq.s32.totalorder %s23, 3
      %p76 = por %p74, %p75
      %p77 = scmp.ne.s32.totalorder %s68, %s69
      %p78 = scmp.eq.s32.totalorder %s23, 0
      %p79 = por %p77, %p78
      %p80 = scmp.ne.s32.totalorder %s68, %s69
      %p81 = scmp.eq.s32.totalorder %s24, 3
      %p82 = por %p80, %p81
      %p84 = scmp.ne.s32.totalorder %s69, %s83
      %p85 = scmp.eq.s32.totalorder %s24, 0
      %p86 = por %p84, %p85
      %s87 = ssub.s32 %s25, %s37
      %p88 = scmp.eq.s32.totalorder %s87, 0
      %s90 = sadd.s32 %s89, 1
      %s91 = scalar_select %p88, %s89, %s90
      %p94 = pneg %p88
      %p95 = scmp.eq.s32.totalorder %s18, 3
      %p96 = por %p94, %p95
      %p97 = scmp.ne.s32.totalorder %s89, %s92
      %p98 = scmp.eq.s32.totalorder %s18, 0
      %p99 = por %p97, %p98
      %p100 = scmp.ne.s32.totalorder %s89, %s92
      %p101 = scmp.eq.s32.totalorder %s23, 3
      %p102 = por %p100, %p101
      %p103 = scmp.ne.s32.totalorder %s92, %s93
      %p104 = scmp.eq.s32.totalorder %s23, 0
      %p105 = por %p103, %p104
      %p106 = scmp.ne.s32.totalorder %s92, %s93
      %p107 = scmp.eq.s32.totalorder %s24, 3
      %p108 = por %p106, %p107
      %p110 = scmp.ne.s32.totalorder %s93, %s109
      %p111 = scmp.eq.s32.totalorder %s24, 0
      %p112 = por %p110, %p111
      %s113 = ssub.s32 %s26, %s33
      %s114 = ssub.s32 %s25, %s37
      %s115 = sor.u32 %s113, %s114
      %p116 = scmp.eq.s32.totalorder %s115, 0
      %s118 = sadd.s32 %s117, 1
      %s119 = scalar_select %p116, %s117, %s118
      %p122 = pneg %p116
      %p123 = scmp.eq.s32.totalorder %s18, 3
      %p124 = por %p122, %p123
      %p125 = scmp.ne.s32.totalorder %s117, %s120
      %p126 = scmp.eq.s32.totalorder %s18, 0
      %p127 = por %p125, %p126
      %p128 = scmp.ne.s32.totalorder %s117, %s120
      %p129 = scmp.eq.s32.totalorder %s23, 3
      %p130 = por %p128, %p129
      %p131 = scmp.ne.s32.totalorder %s120, %s121
      %p132 = scmp.eq.s32.totalorder %s23, 0
      %p133 = por %p131, %p132
      %p134 = scmp.ne.s32.totalorder %s120, %s121
      %p135 = scmp.eq.s32.totalorder %s24, 3
      %p136 = por %p134, %p135
      %p138 = scmp.ne.s32.totalorder %s121, %s137
      %p139 = scmp.eq.s32.totalorder %s24, 0
      %p140 = por %p138, %p139
      %p141 = scmp.le.s32.totalorder 1, %s18
      %p142 = scmp.lt.s32.totalorder %s18, 5
      %p143 = pnand %p141, %p142
      %p144 = pneg %p143
      // Predicated region
      $region9: #{patched_input_adapter_forward.2} parent=5 // pred_check
        _
      $region10: #{patched_input_adapter_forward.2} parent=5 // pred_check_branch
        %146 = sbr.rel (%p143) target = $region12
      $region11: #{patched_input_adapter_forward.2} parent=5 // pred_region
        %s147 = ssub.s32 %s18, 1
        // Predicated region
        $region13: #{patched_input_adapter_forward.2} parent=11 // pred_check
          %p148 = pneg %p79
        $region14: #{patched_input_adapter_forward.2} parent=11 // pred_check_branch
          %150 = sbr.rel (%p148) target = $region16
        $region15: #{patched_input_adapter_forward.2} parent=11 // pred_region
          _
        $region16: #{patched_input_adapter_forward.2} parent=11 // pred_fallthru
          _
      $region12: #{patched_input_adapter_forward.2} parent=5 // pred_fallthru
        _
      %p151 = scmp.lt.s32.totalorder %s18, 4
      // Predicated region
      $region17: #{patched_input_adapter_forward.2} parent=5 // pred_check
        %p152 = pneg %p151
      $region18: #{patched_input_adapter_forward.2} parent=5 // pred_check_branch
        %154 = sbr.rel (%p152) target = $region20
      $region19: #{patched_input_adapter_forward.2} parent=5 // pred_region
        // Predicated region
        $region21: #{patched_input_adapter_forward.2} parent=19 // pred_check
          %p155 = pneg %p52
        $region22: #{patched_input_adapter_forward.2} parent=19 // pred_check_branch
          %157 = sbr.rel (%p155) target = $region24
        $region23: #{patched_input_adapter_forward.2} parent=19 // pred_region
          %s158 = smul.u32 2, %s25
          %s159 = ssub.s32 3, %s158
          %p160 = scmp.lt.s32.totalorder %s159, 2
          %s161 = scalar_select %p160, %s159, 2
          %s162 = smul.u32 64, %s161
          %p163 = scmp.lt.s32.totalorder %s26, 1
          %s164 = scalar_select %p163, %s26, 1
          %p165 = scmp.lt.s32.totalorder %s158, 2
          %s166 = scalar_select %p165, %s158, 2
          %s167 = smul.addr %s164, 3
          %s168 = sadd.s32 %s166, %s167
          %s169 = smul.addr %s168, 4
          %s170 = scalar_lea.vmem %s2, %s169
          %s171 = smul.u32 2, %s25
          %s172 = ssub.s32 3, %s171
          %p173 = scmp.lt.s32.totalorder %s172, 2
          %s174 = scalar_select %p173, %s172, 2
          %s175 = smul.u32 64, %s174
        $region24: #{patched_input_adapter_forward.2} parent=19 // pred_fallthru
          _
        // Predicated region
        $region25: #{patched_input_adapter_forward.2} parent=19 // pred_check
          %p176 = pneg %p99
        $region26: #{patched_input_adapter_forward.2} parent=19 // pred_check_branch
          %178 = sbr.rel (%p176) target = $region28
        $region27: #{patched_input_adapter_forward.2} parent=19 // pred_region
          %s179 = smul.u32 2, %s25
          %s180 = ssub.s32 3, %s179
          %p181 = scmp.lt.s32.totalorder %s180, 2
          %s182 = scalar_select %p181, %s180, 2
          %s183 = smul.u32 128, %s182
          %p184 = scmp.lt.s32.totalorder %s179, 2
          %s185 = scalar_select %p184, %s179, 2
          %s186 = smul.addr %s185, 8
          %s187 = scalar_lea.vmem %s1, %s186
          %s188 = smul.u32 2, %s25
          %s189 = ssub.s32 3, %s188
          %p190 = scmp.lt.s32.totalorder %s189, 2
          %s191 = scalar_select %p190, %s189, 2
          %s192 = smul.u32 128, %s191
        $region28: #{patched_input_adapter_forward.2} parent=19 // pred_fallthru
          _
      $region20: #{patched_input_adapter_forward.2} parent=5 // pred_fallthru
        _
      %p193 = scmp.le.s32.totalorder 1, %s18
      %p194 = scmp.lt.s32.totalorder %s18, 5
      %p195 = pnand %p193, %p194
      %p196 = pneg %p195
      // Predicated region
      $region29: #{patched_input_adapter_forward.2} parent=5 // pred_check
        _
      $region30: #{patched_input_adapter_forward.2} parent=5 // pred_check_branch
        %198 = sbr.rel (%p195) target = $region32
      $region31: #{patched_input_adapter_forward.2} parent=5 // pred_region
        #allocation9 [shape = 'u8[4096]{0}', space=vmem, size = 0x1000, dematerialized = true, scoped, tag = 'FusionAdapter Buffer %fusion.1 = bf16[2,24,128]{2,1,0:T(8,128)(2,1)} fusion(%param_2.5, %param_3.4), kind=kLoop, calls=%fused_computation.3.clone, metadata={op_name="jit(patched_input_adapter_forward)/jit(_pad)/pad" stack_frame_id=9}']
        %s199 = ssub.s32 %s18, 1
        %s200 = smul.u32 2, %s27
        %s201 = ssub.s32 3, %s200
        %p202 = scmp.lt.s32.totalorder %s201, 2
        %s203 = scalar_select %p202, %s201, 2
        %s204 = smul.u32 64, %s203
        %p205 = scmp.lt.s32.totalorder %s28, 1
        %s206 = scalar_select %p205, %s28, 1
        %p207 = scmp.lt.s32.totalorder %s200, 2
        %s208 = scalar_select %p207, %s200, 2
        %s209 = smul.addr %s206, 3
        %s210 = sadd.s32 %s208, %s209
        %s211 = smul.addr %s210, 4
        %s212 = scalar_lea.vmem %s2, %s211
        %p213 = pneg %p58
        %p214 = pneg %p55
        %p215 = pneg %p79
        %p216 = pneg %p76
        %s217 = smul.u32 2, %s27
        %s218 = ssub.s32 3, %s217
        %p219 = scmp.lt.s32.totalorder %s218, 2
        %s220 = scalar_select %p219, %s218, 2
        %s221 = smul.u32 128, %s220
        %p222 = scmp.lt.s32.totalorder %s217, 2
        %s223 = scalar_select %p222, %s217, 2
        %s224 = smul.addr %s223, 8
        %s225 = scalar_lea.vmem %s1, %s224
        %p226 = pneg %p105
        %p227 = pneg %p102
        %p228 = pneg %p133
        %p229 = pneg %p130
        %s230 = sand.u32 %s120, 1
        %s231 = scalar_lea.sflag [#allocation8], %s230
        %s232 = sand.u32 %s120, 1
        %s233 = smul.addr %s232, 16
        %s234 = scalar_lea.vmem [#allocation7], %s233
        %s235 = smul.u32 2, %s27
        %s236 = ssub.s32 3, %s235
        %p237 = scmp.lt.s32.totalorder %s236, 2
        %s238 = scalar_select %p237, %s236, 2
        %s239 = smul.u32 64, %s238
        %p240 = scmp.lt.s32.totalorder %s28, 1
        %s241 = scalar_select %p240, %s28, 1
        %p242 = scmp.lt.s32.totalorder %s235, 2
        %s243 = scalar_select %p242, %s235, 2
        %s244 = smul.addr %s241, 3
        %s245 = sadd.s32 %s243, %s244
        %s246 = smul.addr %s245, 4
        %s247 = scalar_lea.vmem %s2, %s246
        %s248 = smul.u32 2, %s27
        %s249 = ssub.s32 3, %s248
        %p250 = scmp.lt.s32.totalorder %s249, 2
        %s251 = scalar_select %p250, %s249, 2
        %s252 = smul.u32 64, %s251
        %s253 = smul.u32 2, %s27
        %s254 = ssub.s32 3, %s253
        %p255 = scmp.lt.s32.totalorder %s254, 2
        %s256 = scalar_select %p255, %s254, 2
        %s257 = smul.u32 128, %s256
        %p258 = scmp.lt.s32.totalorder %s253, 2
        %s259 = scalar_select %p258, %s253, 2
        %s260 = smul.addr %s259, 8
        %s261 = scalar_lea.vmem %s1, %s260
        %s262 = smul.u32 2, %s27
        %s263 = ssub.s32 3, %s262
        %p264 = scmp.lt.s32.totalorder %s263, 2
        %s265 = scalar_select %p264, %s263, 2
        %s266 = smul.u32 128, %s265
        %s267 = smul.u32 2, %s27
        %s268 = ssub.s32 3, %s267
        %p269 = scmp.lt.s32.totalorder %s268, 2
        %s270 = scalar_select %p269, %s268, 2
        %s271 = smul.u32 128, %s270
        %s273 = sor.u32 255, 127
        %s274 = sand.u32 %s273, 85
        %s275 = sshrl.u32 %s274, 1
        %s276 = sor.u32 %s274, %s275
        %s277 = sand.u32 51, %s276
        %s278 = sshrl.u32 %s277, 2
        %s279 = sor.u32 %s277, %s278
        %s280 = sand.u32 15, %s279
        %v281 = vld [vmem:[%s247] sm:%s280]
        %v282 = vunpack.c.l.bf16 %v281
        %v283 = vunpack.c.h.bf16 %v281
        %v284 = vlaneseq
        %v285 = vand.u32 %v284, 127
        %vm287 = vcmp.lt.s32.totalorder %v285, 64
        %v288 = vsel %vm287, %v282, %v10
        %v289 = vpack.c.bf16 0.0, %v288
        %291 = vst [vmem:[#allocation9] sm:$0xf] %v289
        %s292 = scalar_lea.vmem %s247, 4
        %s293 = sadd.s32 %s248, 1
        %s294 = ssub.s32 2, %s293
        %p295 = scmp.lt.s32.totalorder %s294, 0
        %s296 = scalar_select %p295, 0, 255
        %s297 = sshrl.u32 %s296, 1
        %s298 = sor.u32 %s296, %s297
        %s299 = sand.u32 %s298, 85
        %s300 = sshrl.u32 %s299, 1
        %s301 = sor.u32 %s299, %s300
        %s302 = sand.u32 51, %s301
        %s303 = sshrl.u32 %s302, 2
        %s304 = sor.u32 %s302, %s303
        %s305 = sand.u32 15, %s304
        %v306 = vld [vmem:[%s292] sm:%s305]
        %v307 = vunpack.c.l.bf16 %v306
        %v308 = vunpack.c.h.bf16 %v306
        %s309 = sadd.s32 %s248, 1
        %s310 = ssub.s32 2, %s309
        %v311 = vstv %s310
        %vm312 = vcmp.lt.s32.totalorder %v311, 0
        %v313 = vsel %vm312, %v10, %v307
        %v314 = vlaneseq
        %v315 = vand.u32 %v314, 127
        %vm317 = vcmp.lt.s32.totalorder %v315, 64
        %v318 = vsel %vm317, %v313, %v10
        %s319 = scalar_lea.vmem [#allocation9], 4
        %v320 = vpack.c.bf16 0.0, %v318
        %322 = vst [vmem:[%s319] sm:$0xf] %v320
        %v324 = vld [vmem:[#allocation9] sm:$0xf]
        %v325 = vld [vmem:[#allocation9 + $0x4] sm:$0xf]
        %v326 = vld [vmem:[%s0] sm:$0xf]
        %v327 = vld [vmem:[%s0 + $0x4] sm:$0xf]
        %v328 = vld [vmem:[%s0 + $0x8] sm:$0xf]
        %v329 = vld [vmem:[%s0 + $0xc] sm:$0xf]
        %v330 = vld [vmem:[%s0 + $0x10] sm:$0xf]
        %v331 = vld [vmem:[%s0 + $0x14] sm:$0xf]
        %v332 = vld [vmem:[%s0 + $0x18] sm:$0xf]
        %v333 = vld [vmem:[%s0 + $0x1c] sm:$0xf]
        %v334 = vld [vmem:[%s0 + $0x20] sm:$0xf]
        %v335 = vld [vmem:[%s0 + $0x24] sm:$0xf]
        %v336 = vld [vmem:[%s0 + $0x28] sm:$0xf]
        %v337 = vld [vmem:[%s0 + $0x2c] sm:$0xf]
        %v338 = vld [vmem:[%s0 + $0x30] sm:$0xf]
        %v339 = vld [vmem:[%s0 + $0x34] sm:$0xf]
        %v340 = vld [vmem:[%s0 + $0x38] sm:$0xf]
        %v341 = vld [vmem:[%s0 + $0x3c] sm:$0xf]
        %v342 = vld [vmem:[%s261] sm:$0xff]
        %v343 = vld [vmem:[%s261 + $0x8] sm:$0xff]
        %v346 = vunpack.c.l.b16 %v324
        %v347 = vunpack.c.l.b16 %v325
        %v348 = vpack.c.b16 %v347, %v346
        %v366 = vunpack.c.l.b16 %v326
        %v367 = vunpack.c.l.b16 %v327
        %v368 = vunpack.c.l.b16 %v328
        %v369 = vunpack.c.l.b16 %v329
        %v370 = vunpack.c.l.b16 %v330
        %v371 = vunpack.c.l.b16 %v331
        %v372 = vunpack.c.l.b16 %v332
        %v373 = vunpack.c.l.b16 %v333
        %v374 = vunpack.c.l.b16 %v334
        %v375 = vunpack.c.l.b16 %v335
        %v376 = vunpack.c.l.b16 %v336
        %v377 = vunpack.c.l.b16 %v337
        %v378 = vunpack.c.l.b16 %v338
        %v379 = vunpack.c.l.b16 %v339
        %v380 = vunpack.c.l.b16 %v340
        %v381 = vunpack.c.l.b16 %v341
        %v382 = vpack.c.b16 %v367, %v366
        %v383 = vpack.c.b16 %v369, %v368
        %v384 = vpack.c.b16 %v371, %v370
        %v385 = vpack.c.b16 %v373, %v372
        %v386 = vpack.c.b16 %v375, %v374
        %v387 = vpack.c.b16 %v377, %v376
        %v388 = vpack.c.b16 %v379, %v378
        %v389 = vpack.c.b16 %v381, %v380
        %398 = vmatprep.subr.bf16.mxu0 0
        %399 = vmatpush1.bf16.msra.mxu0 %v382
        %400 = vmatprep.subr.bf16.mxu0 0
        %401 = vmatpush1.bf16.msra.mxu0 %v383
        %402 = vmatprep.subr.bf16.mxu0 0
        %403 = vmatpush1.bf16.msra.mxu0 %v384
        %404 = vmatprep.subr.bf16.mxu0 0
        %405 = vmatpush1.bf16.msra.mxu0 %v385
        %406 = vmatprep.subr.bf16.mxu0 0
        %407 = vmatpush1.bf16.msra.mxu0 %v386
        %408 = vmatprep.subr.bf16.mxu0 0
        %409 = vmatpush1.bf16.msra.mxu0 %v387
        %410 = vmatprep.subr.bf16.mxu0 0
        %411 = vmatpush1.bf16.msra.mxu0 %v388
        %412 = vmatprep.subr.bf16.mxu0 0
        %413 = vmatpush1.bf16.msra.mxu0 %v389
        %414 = vmatprep.subr.bf16.mxu0 0
        %415 = vmatpush1.bf16.msra.mxu0 0
        %416 = vmatprep.subr.bf16.mxu0 0
        %417 = vmatpush1.bf16.msra.mxu0 0
        %418 = vmatprep.subr.bf16.mxu0 0
        %419 = vmatpush1.bf16.msra.mxu0 0
        %420 = vmatprep.subr.bf16.mxu0 0
        %421 = vmatpush1.bf16.msra.mxu0 0
        %422 = vmatprep.subr.bf16.mxu0 0
        %423 = vmatpush1.bf16.msra.mxu0 0
        %424 = vmatprep.subr.bf16.mxu0 0
        %425 = vmatpush1.bf16.msra.mxu0 0
        %426 = vmatprep.subr.bf16.mxu0 0
        %427 = vmatpush1.bf16.msra.mxu0 0
        %428 = vmatprep.subr.bf16.mxu0 0
        %429 = vmatpush1.bf16.msra.mxu0 0
        %430 = vmatprep.mubr.bf16.mxu0 0
        %431 = vmatmul.mubr.bf16.gmra.mrb[0].mxu0 %v348
        %v432 = vpop.f32.mrb[0].mxu0
        %v433 = vadd.f32 %v342, %v432
        %v434 = vpop.f32.mrb[0].mxu0
        %v435 = vpop.f32.mrb[0].mxu0
        %v436 = vadd.f32 %v343, %v435
        %v437 = vpop.f32.mrb[0].mxu0
        %438 = vdwg.mxu0
        %439 = vst [vmem:[%s234] sm:$0xff] %v433
        %440 = vst [vmem:[%s234 + $0x8] sm:$0xff] %v436
        %s441 = sand.u32 %s120, 1
        %s442 = scalar_lea.sflag [#allocation8], %s441
        %s443 = sand.u32 %s120, 1
        %s444 = smul.addr %s443, 16
        %s445 = scalar_lea.vmem [#allocation7], %s444
        // Predicated region
        $region33: #{patched_input_adapter_forward.2} parent=31 // pred_check
          %p446 = pneg %p130
        $region34: #{patched_input_adapter_forward.2} parent=31 // pred_check_branch
          %448 = sbr.rel (%p446) target = $region36
        $region35: #{patched_input_adapter_forward.2} parent=31 // pred_region
          %s449 = smul.u32 2, %s27
          %s450 = ssub.s32 3, %s449
          %p451 = scmp.lt.s32.totalorder %s450, 2
          %s452 = scalar_select %p451, %s450, 2
          %s453 = smul.u32 128, %s452
          %s455 = ssub.s32 256, %s453
          %456 = vsyncadd %s442, %s455
          %p457 = scmp.ne.s32.totalorder 0, %s453
          %s458 = smul.addr %s28, 3
          %s459 = sadd.s32 %s449, %s458
          %s460 = smul.addr %s459, 128
          %s461 = scalar_lea.hbm %s4, %s460
          %s462 = smul.u32 8, %s452
          %s463 = sshll.u32 %s445, 4
          %s464 = int_to_ptr.vmem [resolvable:$true] %s463
          %s465 = sshll.u32 %s462, 4
          %469 = dma.vmem_to_hbm [thread:$0]  (%p457), %s464, %s465, %s461, %s442, 128, 128, 8
        $region36: #{patched_input_adapter_forward.2} parent=31 // pred_fallthru
          _
      $region32: #{patched_input_adapter_forward.2} parent=5 // pred_fallthru
        _
      %p470 = scmp.le.s32.totalorder 2, %s18
      // Predicated region
      $region37: #{patched_input_adapter_forward.2} parent=5 // pred_check
        %p471 = pneg %p470
      $region38: #{patched_input_adapter_forward.2} parent=5 // pred_check_branch
        %473 = sbr.rel (%p471) target = $region40
      $region39: #{patched_input_adapter_forward.2} parent=5 // pred_region
        %s474 = ssub.s32 %s18, 2
        // Predicated region
        $region41: #{patched_input_adapter_forward.2} parent=39 // pred_check
          %p475 = pneg %p136
        $region42: #{patched_input_adapter_forward.2} parent=39 // pred_check_branch
          %477 = sbr.rel (%p475) target = $region44
        $region43: #{patched_input_adapter_forward.2} parent=39 // pred_region
          %s478 = sand.u32 %s121, 1
          %s479 = scalar_lea.sflag [#allocation8], %s478
          %s480 = sand.u32 %s121, 1
          %s481 = smul.addr %s480, 16
          %s482 = scalar_lea.vmem [#allocation7], %s481
          %483 = dma.done %s479, 256
        $region44: #{patched_input_adapter_forward.2} parent=39 // pred_fallthru
          _
      $region40: #{patched_input_adapter_forward.2} parent=5 // pred_fallthru
        _
    $region6: #{patched_input_adapter_forward.2} parent=1 // loop_footer
      %s22 = sadd.s32 1, %s18
    $region7: #{patched_input_adapter_forward.2} parent=1 // loop_footer_branch
      %17 = sbr.rel target = $region3
    $region8: #{patched_input_adapter_forward.2} parent=1 // loop_exit
      _
    %484 = vsyncpa [#allocation8], 1
    %s485 = scalar_lea.sflag [#allocation8], 1
    %486 = vsyncpa %s485, 1

</llo_original>
